<compile_context>
chip_gen: v7x
topology: tpu7x:2x2x1
jax: 0.10.0
libtpu: 0.0.40
codegen_flags: <defaults>
</compile_context>

<pallas_src>
import functools

import jax
import jax.numpy as jnp
from jax.experimental import pallas as pl
from jax.experimental.pallas import tpu as pltpu


def _featmag_kernel(pos_ref, neg_ref, out_ref, acc_pos_ref, acc_neg_ref, *,
                    margin, inv_t):
    """Grid = (B_tiles, T_tiles); axis 1 (T) is the reduction axis.

    pos_ref/neg_ref : (b_tile, t_tile, D) input blocks (f32 or bf16).
    out_ref         : (b_tile, 128) lane-dense per-batch squared-loss output.
    acc_*_ref       : (b_tile, D) f32 VMEM accumulators (temporal sums).
    """
    t = pl.program_id(1)

    @pl.when(t == 0)
    def _init():
        acc_pos_ref[...] = jnp.zeros_like(acc_pos_ref)
        acc_neg_ref[...] = jnp.zeros_like(acc_neg_ref)

    # Temporal SUM (the 1/T is folded into the norm at finalize time).
    acc_pos_ref[...] += jnp.sum(pos_ref[...].astype(jnp.float32), axis=1)
    acc_neg_ref[...] += jnp.sum(neg_ref[...].astype(jnp.float32), axis=1)

    @pl.when(t == pl.num_programs(1) - 1)
    def _finalize():
        sum_pos = acc_pos_ref[...]                                    # (b_tile, D)
        sum_neg = acc_neg_ref[...]
        # ||mean_t(x)||_2 == ||sum_t(x)||_2 / T
        norm_pos = jnp.sqrt(jnp.sum(sum_pos * sum_pos, axis=1, keepdims=True)) * inv_t
        norm_neg = jnp.sqrt(jnp.sum(sum_neg * sum_neg, axis=1, keepdims=True)) * inv_t
        loss_act = jnp.maximum(margin - norm_pos, 0.0)                # hinge
        sq = (loss_act + norm_neg) ** 2                               # (b_tile, 1)
        out_ref[...] = jnp.broadcast_to(sq, out_ref.shape)            # lane-dense


def featmag_loss(feat_pos, feat_neg, margin, w_scale=1.0, *,
                 b_tile=None, t_tile=None,
                 vmem_block_bytes=2 * 1024 * 1024):
    """Pallas implementation of FeatMag.forward.  Returns a scalar float32."""
    assert feat_pos.shape == feat_neg.shape and feat_pos.ndim == 3
    B, T, D = feat_pos.shape
    itemsize = jnp.dtype(feat_pos.dtype).itemsize

    # --- pad the feature dim to a lane multiple (zeros are exact for norms) --
    D_pad = max(128, ((D + 127) // 128) * 128)

    # --- tile selection ------------------------------------------------------
    if b_tile is None:
        b_tile = B if B <= 8 else 8                 # sublane-friendly batch tile
    if t_tile is None:
        rows = max(8, vmem_block_bytes // max(b_tile * D_pad * itemsize, 1))
        rows = (rows // 8) * 8                      # multiple of 8 sublanes
        t_tile = int(min(rows, ((T + 7) // 8) * 8))
    t_tile = max(8, (t_tile // 8) * 8)

    B_pad = ((B + b_tile - 1) // b_tile) * b_tile
    T_pad = ((T + t_tile - 1) // t_tile) * t_tile
    if (B_pad, T_pad, D_pad) != (B, T, D):
        pad = ((0, B_pad - B), (0, T_pad - T), (0, D_pad - D))
        feat_pos = jnp.pad(feat_pos, pad)           # zero pad: exact for sum/norm
        feat_neg = jnp.pad(feat_neg, pad)

    nb, nt = B_pad // b_tile, T_pad // t_tile
    kernel = functools.partial(_featmag_kernel,
                               margin=float(margin), inv_t=1.0 / float(T))

    cost = pl.CostEstimate(
        flops=4 * B_pad * T_pad * D_pad,
        transcendentals=2 * B_pad,
        bytes_accessed=2 * B_pad * T_pad * D_pad * itemsize + B_pad * 128 * 4,
    )

    partial_sq = pl.pallas_call(
        kernel,
        out_shape=jax.ShapeDtypeStruct((B_pad, 128), jnp.float32),
        grid_spec=pltpu.PrefetchScalarGridSpec(
            num_scalar_prefetch=0,
            grid=(nb, nt),
            in_specs=[
                pl.BlockSpec((b_tile, t_tile, D_pad), lambda b, t: (b, t, 0)),
                pl.BlockSpec((b_tile, t_tile, D_pad), lambda b, t: (b, t, 0)),
            ],
            out_specs=pl.BlockSpec((b_tile, 128), lambda b, t: (b, 0)),
            scratch_shapes=[
                pltpu.VMEM((b_tile, D_pad), jnp.float32),
                pltpu.VMEM((b_tile, D_pad), jnp.float32),
            ],
        ),
        compiler_params=pltpu.CompilerParams(
            dimension_semantics=("parallel", "arbitrary")),
        cost_estimate=cost,
    )(feat_pos, feat_neg)

    # Final batch mean and w_scale divide over the tiny per-batch partials.
    return jnp.mean(partial_sq[:B, 0]) / w_scale


def featmag_loss_ref(feat_pos, feat_neg, margin, w_scale=1.0):
    """Pure-JAX reference (mirror of the PyTorch forward)."""
    loss_act = margin - jnp.linalg.norm(jnp.mean(feat_pos, axis=1), axis=1)
    loss_act = jnp.where(loss_act < 0, 0.0, loss_act)
    loss_bkg = jnp.linalg.norm(jnp.mean(feat_neg, axis=1), axis=1)
    return jnp.mean((loss_act + loss_bkg) ** 2) / w_scale


if __name__ == "__main__":
    key = jax.random.PRNGKey(0)
    k_pos, k_neg = jax.random.split(key)

    margin = 100.0
    w_scale = 1.0

    # Small deterministic inputs: batch=2, temporal=8, feature=128.
    B, T, D = 2, 8, 128
    feat_pos = jax.random.normal(k_pos, (B, T, D), dtype=jnp.float32)
    feat_neg = jax.random.normal(k_neg, (B, T, D), dtype=jnp.float32) * 0.1

    loss = jax.block_until_ready(featmag_loss(feat_pos, feat_neg, margin, w_scale))
    ref = featmag_loss_ref(feat_pos, feat_neg, margin, w_scale)
    assert jnp.allclose(loss, ref, rtol=1e-4, atol=1e-4), (loss, ref)

    # Ragged shapes + multi-tile temporal reduction exercise the grid /
    # accumulator / padding path (B=5, T=37, D=200 -> padded to 256).
    B2, T2, D2 = 5, 37, 200
    fp2 = jax.random.normal(jax.random.PRNGKey(1), (B2, T2, D2), jnp.float32)
    fn2 = jax.random.normal(jax.random.PRNGKey(2), (B2, T2, D2), jnp.float32) * 0.3
    l2 = jax.block_until_ready(featmag_loss(fp2, fn2, margin, w_scale, t_tile=16))
    r2 = featmag_loss_ref(fp2, fn2, margin, w_scale)
    assert jnp.allclose(l2, r2, rtol=1e-4, atol=1e-4), (l2, r2)

    print("KERNEL_OK")
</pallas_src>

<mosaic_0001>
module attributes {stable_mosaic.version = 11 : i64} {
  func.func @_featmag_kernel(%arg0: i32, %arg1: i32, %arg2: memref<2x8x128xf32, #tpu.memory_space<vmem>>, %arg3: memref<2x8x128xf32, #tpu.memory_space<vmem>>, %arg4: memref<2x128xf32, #tpu.memory_space<vmem>>, %arg5: memref<2x128xf32, #tpu.memory_space<vmem>>, %arg6: memref<2x128xf32, #tpu.memory_space<vmem>>) attributes {dimension_semantics = [#tpu.dimension_semantics<parallel>, #tpu.dimension_semantics<arbitrary>], iteration_bounds = array<i64: 1, 1>, scalar_prefetch = 0 : i64, scratch_operands = 2 : i64, tpu.core_type = #tpu.core_type<tc>, window_params = [{transform_indices = @transform_0, window_bounds = array<i64: 2, 8, 128>}, {transform_indices = @transform_1, window_bounds = array<i64: 2, 8, 128>}, {transform_indices = @transform_2, window_bounds = array<i64: 2, 128>}]} {
    %c0_i32 = arith.constant 0 : i32
    %0 = arith.cmpi eq, %arg1, %c0_i32 : i32
    %1 = arith.extui %0 : i1 to i32
    %c0_i32_0 = arith.constant 0 : i32
    %2 = arith.cmpi ne, %1, %c0_i32_0 : i32
    scf.if %2 {
      %cst_17 = arith.constant 0.000000e+00 : f32
      %16 = vector.broadcast %cst_17 : f32 to vector<2x128xf32>
      %c0_18 = arith.constant 0 : index
      %c0_19 = arith.constant 0 : index
      %17 = vector.load %arg5[%c0_18, %c0_19] : memref<2x128xf32, #tpu.memory_space<vmem>>, vector<2x128xf32>
      tpu.vector_store %arg5[%c0_18, %c0_19], %16 {strides = array<i32>} : memref<2x128xf32, #tpu.memory_space<vmem>>, vector<2x128xf32>,
      %cst_20 = arith.constant 0.000000e+00 : f32
      %18 = vector.broadcast %cst_20 : f32 to vector<2x128xf32>
      %c0_21 = arith.constant 0 : index
      %c0_22 = arith.constant 0 : index
      %19 = vector.load %arg6[%c0_21, %c0_22] : memref<2x128xf32, #tpu.memory_space<vmem>>, vector<2x128xf32>
      tpu.vector_store %arg6[%c0_21, %c0_22], %18 {strides = array<i32>} : memref<2x128xf32, #tpu.memory_space<vmem>>, vector<2x128xf32>,
    } else {
    }
    %c0 = arith.constant 0 : index
    %c0_1 = arith.constant 0 : index
    %3 = vector.load %arg5[%c0, %c0_1] : memref<2x128xf32, #tpu.memory_space<vmem>>, vector<2x128xf32>
    %c0_2 = arith.constant 0 : index
    %c0_3 = arith.constant 0 : index
    %c0_4 = arith.constant 0 : index
    %4 = vector.load %arg2[%c0_2, %c0_3, %c0_4] : memref<2x8x128xf32, #tpu.memory_space<vmem>>, vector<2x8x128xf32>
    %cst = arith.constant dense<0.000000e+00> : vector<2x128xf32>
    %5 = vector.multi_reduction <add>, %4, %cst [1] : vector<2x8x128xf32> to vector<2x128xf32>
    %6 = arith.addf %3, %5 : vector<2x128xf32>
    %c0_5 = arith.constant 0 : index
    %c0_6 = arith.constant 0 : index
    %7 = vector.load %arg5[%c0_5, %c0_6] : memref<2x128xf32, #tpu.memory_space<vmem>>, vector<2x128xf32>
    tpu.vector_store %arg5[%c0_5, %c0_6], %6 {strides = array<i32>} : memref<2x128xf32, #tpu.memory_space<vmem>>, vector<2x128xf32>,
    %c0_7 = arith.constant 0 : index
    %c0_8 = arith.constant 0 : index
    %8 = vector.load %arg6[%c0_7, %c0_8] : memref<2x128xf32, #tpu.memory_space<vmem>>, vector<2x128xf32>
    %c0_9 = arith.constant 0 : index
    %c0_10 = arith.constant 0 : index
    %c0_11 = arith.constant 0 : index
    %9 = vector.load %arg3[%c0_9, %c0_10, %c0_11] : memref<2x8x128xf32, #tpu.memory_space<vmem>>, vector<2x8x128xf32>
    %cst_12 = arith.constant dense<0.000000e+00> : vector<2x128xf32>
    %10 = vector.multi_reduction <add>, %9, %cst_12 [1] : vector<2x8x128xf32> to vector<2x128xf32>
    %11 = arith.addf %8, %10 : vector<2x128xf32>
    %c0_13 = arith.constant 0 : index
    %c0_14 = arith.constant 0 : index
    %12 = vector.load %arg6[%c0_13, %c0_14] : memref<2x128xf32, #tpu.memory_space<vmem>>, vector<2x128xf32>
    tpu.vector_store %arg6[%c0_13, %c0_14], %11 {strides = array<i32>} : memref<2x128xf32, #tpu.memory_space<vmem>>, vector<2x128xf32>,
    %c0_i32_15 = arith.constant 0 : i32
    %13 = arith.cmpi eq, %arg1, %c0_i32_15 : i32
    %14 = arith.extui %13 : i1 to i32
    %c0_i32_16 = arith.constant 0 : i32
    %15 = arith.cmpi ne, %14, %c0_i32_16 : i32
    scf.if %15 {
      %c0_17 = arith.constant 0 : index
      %c0_18 = arith.constant 0 : index
      %16 = vector.load %arg5[%c0_17, %c0_18] : memref<2x128xf32, #tpu.memory_space<vmem>>, vector<2x128xf32>
      %c0_19 = arith.constant 0 : index
      %c0_20 = arith.constant 0 : index
      %17 = vector.load %arg6[%c0_19, %c0_20] : memref<2x128xf32, #tpu.memory_space<vmem>>, vector<2x128xf32>
      %18 = arith.mulf %16, %16 : vector<2x128xf32>
      %cst_21 = arith.constant dense<0.000000e+00> : vector<2xf32>
      %19 = vector.multi_reduction <add>, %18, %cst_21 [1] : vector<2x128xf32> to vector<2xf32>
      %20 = vector.shape_cast %19 : vector<2xf32> to vector<2x1xf32>
      %21 = math.sqrt %20 : vector<2x1xf32>
      %cst_22 = arith.constant 1.250000e-01 : f32
      %22 = vector.broadcast %cst_22 : f32 to vector<2x1xf32>
      %23 = arith.mulf %21, %22 : vector<2x1xf32>
      %24 = arith.mulf %17, %17 : vector<2x128xf32>
      %cst_23 = arith.constant dense<0.000000e+00> : vector<2xf32>
      %25 = vector.multi_reduction <add>, %24, %cst_23 [1] : vector<2x128xf32> to vector<2xf32>
      %26 = vector.shape_cast %25 : vector<2xf32> to vector<2x1xf32>
      %27 = math.sqrt %26 : vector<2x1xf32>
      %cst_24 = arith.constant 1.250000e-01 : f32
      %28 = vector.broadcast %cst_24 : f32 to vector<2x1xf32>
      %29 = arith.mulf %27, %28 : vector<2x1xf32>
      %cst_25 = arith.constant 1.000000e+02 : f32
      %30 = vector.broadcast %cst_25 : f32 to vector<2x1xf32>
      %31 = arith.subf %30, %23 : vector<2x1xf32>
      %cst_26 = arith.constant 0.000000e+00 : f32
      %32 = vector.broadcast %cst_26 : f32 to vector<2x1xf32>
      %33 = arith.maximumf %31, %32 : vector<2x1xf32>
      %34 = arith.addf %33, %29 : vector<2x1xf32>
      %35 = arith.mulf %34, %34 : vector<2x1xf32>
      %36 = vector.shape_cast %35 : vector<2x1xf32> to vector<2x1xf32>
      %37 = vector.broadcast %36 : vector<2x1xf32> to vector<2x128xf32>
      %c0_27 = arith.constant 0 : index
      %c0_28 = arith.constant 0 : index
      %38 = vector.load %arg4[%c0_27, %c0_28] : memref<2x128xf32, #tpu.memory_space<vmem>>, vector<2x128xf32>
      tpu.vector_store %arg4[%c0_27, %c0_28], %37 {strides = array<i32>} : memref<2x128xf32, #tpu.memory_space<vmem>>, vector<2x128xf32>,
    } else {
    }
    return
  }
  func.func @transform_0(%arg0: i32, %arg1: i32) -> (i32, i32, i32) {
    %c0_i32 = arith.constant 0 : i32
    %c0_i32_0 = arith.constant 0 : i32
    return %arg0, %arg1, %c0_i32 : i32, i32, i32
  }
  func.func @transform_1(%arg0: i32, %arg1: i32) -> (i32, i32, i32) {
    %c0_i32 = arith.constant 0 : i32
    %c0_i32_0 = arith.constant 0 : i32
    return %arg0, %arg1, %c0_i32 : i32, i32, i32
  }
  func.func @transform_2(%arg0: i32, %arg1: i32) -> (i32, i32) {
    %c0_i32 = arith.constant 0 : i32
    %c0_i32_0 = arith.constant 0 : i32
    return %arg0, %c0_i32 : i32, i32
  }
}

</mosaic_0001>

<llo_original>
// kernel: tpu_custom_call.1
$region0: #{tpu_custom_call.1}
  #allocation0 [shape = 'u32[]', space=smem, size = 0x4, offset = 0x4, fixed_abs, tag = 'smem constant byte address 0x4 - core index']
  #allocation1 [shape = 'u32[144,128]{1,0:T(1,128)}', space=vmem, size = 0x12000, scoped, tag = 'internal scratch']
  #allocation2 [shape = 'f32[2,128]{1,0:T(2,128)}', space=vmem, size = 0x400, scoped, tag = 'scratch operand']
  #allocation3 [shape = 'f32[2,128]{1,0:T(2,128)}', space=vmem, size = 0x400, scoped, tag = 'scratch operand']
  %s0 = inlined_call_operand.hbm [shape: f32[2,8,128], index: 0, kind: input, shape index: {}]
  %s1 = inlined_call_operand.hbm [shape: f32[2,8,128], index: 1, kind: input, shape index: {}]
  %s2 = inlined_call_operand.hbm [shape: f32[2,128], index: 2, kind: output, shape index: {}]
  %s3 = sld [smem:[#allocation0]]
  $region34: #{tpu_custom_call.1} parent=0
    _
  %s5 = ssub.s32 1, %s3
  %s6 = scalar_select 0, %s5, %s3
  $region1: #{tpu_custom_call.1} parent=0
    #allocation4 [shape = 'u8[8192]{0}', space=vmem, size = 0x2000, scoped, tag = 'input window, operand 0, single buffered']
    #allocation5 [shape = 's32[1]{0}', space=sflag, size = 0x4, scoped, tag = 'scoped memory for tpu_custom_call.1']
    #allocation6 [shape = 's32[1]{0}', space=sflag, size = 0x4, scoped, tag = 'scoped memory for tpu_custom_call.1']
    #allocation7 [shape = 'u8[8192]{0}', space=vmem, size = 0x2000, scoped, tag = 'input window, operand 1, single buffered']
    #allocation8 [shape = 's32[1]{0}', space=sflag, size = 0x4, scoped, tag = 'scoped memory for tpu_custom_call.1']
    #allocation9 [shape = 'u8[1024]{0}', space=vmem, size = 0x400, scoped, tag = 'output window, operand 0, single buffered']
    %7 = vsyncpa [#allocation5], 0
    %8 = vsyncpa [#allocation8], 0
    %9 = vsyncpa [#allocation6], 0
    // Predicated region
    $region2: #{tpu_custom_call.1} parent=1 // pred_check
      _
    $region3: #{tpu_custom_call.1} parent=1 // pred_check_branch
      %11 = sbr.rel (0) target = $region5
    $region4: #{tpu_custom_call.1} parent=1 // pred_region
      %s13 = ssub.s32 256, 256
      %14 = vsyncadd [#allocation5], %s13
      %s15 = sshll.u32 [#allocation4], 4
      %s16 = int_to_ptr.vmem [resolvable:$true] %s15
      %21 = dma.hbm_to_vmem [thread:$0]  %s0, 256, %s16, [#allocation5], 128, 128, 8
    $region5: #{tpu_custom_call.1} parent=1 // pred_fallthru
      _
    // Predicated region
    $region6: #{tpu_custom_call.1} parent=1 // pred_check
      _
    $region7: #{tpu_custom_call.1} parent=1 // pred_check_branch
      %23 = sbr.rel (0) target = $region9
    $region8: #{tpu_custom_call.1} parent=1 // pred_region
      %s25 = ssub.s32 256, 256
      %26 = vsyncadd [#allocation8], %s25
      %s27 = sshll.u32 [#allocation7], 4
      %s28 = int_to_ptr.vmem [resolvable:$true] %s27
      %33 = dma.hbm_to_vmem [thread:$0]  %s1, 256, %s28, [#allocation8], 128, 128, 8
    $region9: #{tpu_custom_call.1} parent=1 // pred_fallthru
      _
    // Predicated region
    $region10: #{tpu_custom_call.1} parent=1 // pred_check
      _
    $region11: #{tpu_custom_call.1} parent=1 // pred_check_branch
      %35 = sbr.rel (0) target = $region13
    $region12: #{tpu_custom_call.1} parent=1 // pred_region
      %36 = dma.done [#allocation5], 256
    $region13: #{tpu_custom_call.1} parent=1 // pred_fallthru
      _
    // Predicated region
    $region14: #{tpu_custom_call.1} parent=1 // pred_check
      _
    $region15: #{tpu_custom_call.1} parent=1 // pred_check_branch
      %38 = sbr.rel (0) target = $region17
    $region16: #{tpu_custom_call.1} parent=1 // pred_region
      %39 = dma.done [#allocation8], 256
    $region17: #{tpu_custom_call.1} parent=1 // pred_fallthru
      _
    %p40 = scmp.eq.s32.totalorder 0, 0
    // Predicated region
    $region18: #{tpu_custom_call.1} parent=1 // pred_check
      %p41 = pneg %p40
    $region19: #{tpu_custom_call.1} parent=1 // pred_check_branch
      %43 = sbr.rel (%p41) target = $region21
    $region20: #{tpu_custom_call.1} parent=1 // pred_region
      %44 = vst [vmem:[#allocation2] sm:$0x3] 0.0
      %45 = vst [vmem:[#allocation3] sm:$0x3] 0.0
    $region21: #{tpu_custom_call.1} parent=1 // pred_fallthru
      _
    %v46 = vld [vmem:[#allocation2] sm:$0x3]
    %v47 = vld [vmem:[#allocation4] sm:$0xff]
    %v48 = vld [vmem:[#allocation4 + $0x8] sm:$0xff]
    %v49 = vrot.slane %v47, 4
    %v50 = vadd.f32 %v47, %v49
    %v51 = vrot.slane %v50, 2
    %v52 = vadd.f32 %v50, %v51
    %v53 = vrot.slane %v52, 1
    %v54 = vadd.f32 %v52, %v53
    %v55 = vrot.slane %v48, 4
    %v56 = vadd.f32 %v48, %v55
    %v57 = vrot.slane %v56, 2
    %v58 = vadd.f32 %v56, %v57
    %v59 = vrot.slane %v58, 1
    %v60 = vadd.f32 %v58, %v59
    %vm63 = vcmask 1041409
    %v64 = vsel %vm63, %v60, %v54
    %v66 = vadd.f32 %v46, %v64
    %67 = vst [vmem:[#allocation2] sm:$0x3] %v66
    %v68 = vld [vmem:[#allocation3] sm:$0x3]
    %v69 = vld [vmem:[#allocation7] sm:$0xff]
    %v70 = vld [vmem:[#allocation7 + $0x8] sm:$0xff]
    %v71 = vrot.slane %v69, 4
    %v72 = vadd.f32 %v69, %v71
    %v73 = vrot.slane %v72, 2
    %v74 = vadd.f32 %v72, %v73
    %v75 = vrot.slane %v74, 1
    %v76 = vadd.f32 %v74, %v75
    %v77 = vrot.slane %v70, 4
    %v78 = vadd.f32 %v70, %v77
    %v79 = vrot.slane %v78, 2
    %v80 = vadd.f32 %v78, %v79
    %v81 = vrot.slane %v80, 1
    %v82 = vadd.f32 %v80, %v81
    %v85 = vsel %vm63, %v82, %v76
    %v87 = vadd.f32 %v68, %v85
    %88 = vst [vmem:[#allocation3] sm:$0x3] %v87
    // Predicated region
    $region22: #{tpu_custom_call.1} parent=1 // pred_check
      %p89 = pneg %p40
    $region23: #{tpu_custom_call.1} parent=1 // pred_check_branch
      %91 = sbr.rel (%p89) target = $region25
    $region24: #{tpu_custom_call.1} parent=1 // pred_region
      %v92 = vld [vmem:[#allocation2] sm:$0x3]
      %v93 = vld [vmem:[#allocation3] sm:$0x3]
      %v94 = vmul.f32 %v92, %v92
      %vm95 = vcmask 1041408
      %v96 = vsel %vm95, %v94, 0.0
      %97 = vadd.xlane.f32.xlu0 %v96
      %v98 = vpop.xlane.xlu0 %97
      %v99 = vrsqrt.pop %v98
      %v100 = vmul.f32 %v98, %v99
      %vm101 = vcmp.eq.f32.partialorder %v98, inf
      %v102 = vsel %vm101, %v98, %v100
      %vm103 = vcmp.eq.f32.partialorder %v98, 0.0
      %v104 = vand.u32 %v98, 2147483648
      %v105 = vsel %vm103, %v104, %v102
      %v106 = vmul.f32 %v105, 0.125
      %v107 = vmul.f32 %v93, %v93
      %v108 = vsel %vm95, %v107, 0.0
      %109 = vadd.xlane.f32.xlu0 %v108
      %v110 = vpop.xlane.xlu0 %109
      %v111 = vrsqrt.pop %v110
      %v112 = vmul.f32 %v110, %v111
      %vm113 = vcmp.eq.f32.partialorder %v110, inf
      %v114 = vsel %vm113, %v110, %v112
      %vm115 = vcmp.eq.f32.partialorder %v110, 0.0
      %v116 = vand.u32 %v110, 2147483648
      %v117 = vsel %vm115, %v116, %v114
      %v118 = vmul.f32 %v117, 0.125
      %v119 = vsub.f32 100.0, %v106
      %v120 = vmax.f32 %v119, 0.0
      %v121 = vadd.f32 %v120, %v118
      %v122 = vmul.f32 %v121, %v121
      %123 = vst [vmem:[#allocation9] sm:$0x3] %v122
    $region25: #{tpu_custom_call.1} parent=1 // pred_fallthru
      _
    // Predicated region
    $region26: #{tpu_custom_call.1} parent=1 // pred_check
      _
    $region27: #{tpu_custom_call.1} parent=1 // pred_check_branch
      %125 = sbr.rel (0) target = $region29
    $region28: #{tpu_custom_call.1} parent=1 // pred_region
      %s127 = ssub.s32 32, 32
      %128 = vsyncadd [#allocation6], %s127
      %s130 = sshll.u32 [#allocation9], 4
      %s131 = int_to_ptr.vmem [resolvable:$true] %s130
      %133 = dma.vmem_to_hbm [thread:$0]  %s131, 32, %s2, [#allocation6]
    $region29: #{tpu_custom_call.1} parent=1 // pred_fallthru
      _
    // Predicated region
    $region30: #{tpu_custom_call.1} parent=1 // pred_check
      _
    $region31: #{tpu_custom_call.1} parent=1 // pred_check_branch
      %135 = sbr.rel (0) target = $region33
    $region32: #{tpu_custom_call.1} parent=1 // pred_region
      %136 = dma.done [#allocation6], 32
    $region33: #{tpu_custom_call.1} parent=1 // pred_fallthru
      _
    %137 = vsyncpa [#allocation5], 1
    %138 = vsyncpa [#allocation8], 1
    %139 = vsyncpa [#allocation6], 1

</llo_original>
